<compile_context>
chip_gen: v5e
topology: v5e:2x2
jax: 0.10.0
libtpu: 0.0.40
codegen_flags: <defaults>
</compile_context>

<pallas_src>
import jax
import jax.numpy as jnp
from jax.experimental import pallas as pl
from jax.experimental.pallas import tpu as pltpu


def _round_up(x, m):
    return ((x + m - 1) // m) * m


def _largest_divisor_leq(n, cap):
    cap = max(1, min(n, cap))
    for d in range(cap, 0, -1):
        if n % d == 0:
            return d
    return 1


# ----------------------------------------------------------------------------
# Kernels
# ----------------------------------------------------------------------------
def _linear_relu_kernel(x_ref, w_ref, b_ref, o_ref):
    # Single-shot (K collapsed): x (tm, F) bf16, w (F, tn) bf16 -> o (tm, tn) f32.
    acc = jnp.dot(x_ref[...], w_ref[...], preferred_element_type=jnp.float32)
    o_ref[...] = jnp.maximum(acc + b_ref[...], 0.0)


def _linear_relu_kernel_kred(x_ref, w_ref, b_ref, o_ref):
    # K-tiled fallback: accumulate directly into the resident f32 output block.
    k = pl.program_id(2)

    @pl.when(k == 0)
    def _():
        o_ref[...] = jnp.zeros_like(o_ref)

    o_ref[...] += jnp.dot(x_ref[...], w_ref[...],
                          preferred_element_type=jnp.float32)

    @pl.when(k == pl.num_programs(2) - 1)
    def _():
        o_ref[...] = jnp.maximum(o_ref[...] + b_ref[...], 0.0)


# ----------------------------------------------------------------------------
# One-time parameter preparation (do this once at init, NOT per forward call)
# ----------------------------------------------------------------------------
def prepare_params(weight, bias):
    """Pad to 128-multiples, transpose to (F, O) and cast to bf16 -- once."""
    O, F = weight.shape
    F_pad = _round_up(F, 128)
    O_pad = _round_up(O, 128)
    w = weight
    if (O_pad, F_pad) != (O, F):
        w = jnp.pad(w, ((0, O_pad - O), (0, F_pad - F)))
    w_t = jnp.asarray(w.T, dtype=jnp.bfloat16)          # (F_pad, O_pad)
    b2 = bias.astype(jnp.float32).reshape(1, O)
    if O_pad != O:
        b2 = jnp.pad(b2, ((0, 0), (0, O_pad - O)))
    return w_t, b2                                       # (F_pad, O_pad), (1, O_pad)


# ----------------------------------------------------------------------------
# Forward
# ----------------------------------------------------------------------------
def one_layer_nn_prepared(x, w_t, b2, output_dim, *,
                          max_tm=256, max_tn=512, max_tk=1024,
                          vmem_budget_bytes=32 * 1024 * 1024):
    """relu(flatten(x) @ W^T + b) with pre-prepared (F_pad, O_pad) bf16 weight."""
    B = x.shape[0]
    F_pad, O_pad = w_t.shape
    x_flat = x.reshape(B, -1)
    F = x_flat.shape[1]

    # --- row (M) tiling: bf16 activations need sublane multiples of 16 -------
    tm = min(_round_up(max_tm, 16), _round_up(B, 16))
    Bp = _round_up(B, tm)
    mb = Bp // tm

    # --- output (N) tiling: pick a 128-multiple that divides O_pad -----------
    n_units = O_pad // 128
    tn_units = _largest_divisor_leq(n_units, max(1, max_tn // 128))
    if mb == 1 and n_units // tn_units == 1 and n_units >= 2:
        # Megacore guard: make sure there are >= 2 parallel blocks (v7x 2 TCs).
        tn_units = _largest_divisor_leq(n_units, max(1, n_units // 2))
    tn = 128 * tn_units
    nb = O_pad // tn

    # --- activations: cast + pad per call (cheap; weight already prepared) ---
    x_flat = x_flat.astype(jnp.bfloat16)
    if (Bp, F_pad) != (B, F):
        x_flat = jnp.pad(x_flat, ((0, Bp - B), (0, F_pad - F)))

    # --- K handling: collapse the reduction axis when the tiles fit VMEM -----
    def _vmem_estimate(tk):
        # double-buffered bf16 inputs + double-buffered f32 output + bias
        return 2 * (tm * tk * 2) + 2 * (tk * tn * 2) + 2 * (tm * tn * 4) + tn * 4

    if _vmem_estimate(F_pad) <= vmem_budget_bytes:
        grid = (mb, nb)
        kernel = _linear_relu_kernel
        in_specs = [
            pl.BlockSpec((tm, F_pad), lambda i, j: (i, 0)),   # x tile (full K)
            pl.BlockSpec((F_pad, tn), lambda i, j: (0, j)),   # weight tile (F, O)
            pl.BlockSpec((1, tn), lambda i, j: (0, j)),       # bias tile
        ]
        out_spec = pl.BlockSpec((tm, tn), lambda i, j: (i, j))
        dims = ("parallel", "parallel")
    else:
        k_units = F_pad // 128
        tk_units = _largest_divisor_leq(k_units, max(1, max_tk // 128))
        tk = 128 * tk_units
        grid = (mb, nb, k_units // tk_units)
        kernel = _linear_relu_kernel_kred
        in_specs = [
            pl.BlockSpec((tm, tk), lambda i, j, k: (i, k)),
            pl.BlockSpec((tk, tn), lambda i, j, k: (k, j)),
            pl.BlockSpec((1, tn), lambda i, j, k: (0, j)),
        ]
        out_spec = pl.BlockSpec((tm, tn), lambda i, j, k: (i, j))
        dims = ("parallel", "parallel", "arbitrary")

    out = pl.pallas_call(
        kernel,
        out_shape=jax.ShapeDtypeStruct((Bp, O_pad), jnp.float32),
        grid_spec=pltpu.PrefetchScalarGridSpec(
            num_scalar_prefetch=0,
            grid=grid,
            in_specs=in_specs,
            out_specs=out_spec,
        ),
        compiler_params=pltpu.CompilerParams(
            dimension_semantics=dims,
            vmem_limit_bytes=48 * 1024 * 1024,   # conservative: v7x has 64 MiB VMEM
        ),
        cost_estimate=pl.CostEstimate(
            flops=2 * Bp * F_pad * O_pad,
            transcendentals=0,
            bytes_accessed=(Bp * F_pad + F_pad * O_pad) * 2
                           + (Bp * O_pad + O_pad) * 4,
        ),
    )(x_flat, w_t, b2)

    return out[:B, :output_dim]


def one_layer_nn(x, weight, bias, **kwargs):
    """Convenience wrapper. In a real model call prepare_params() once at init."""
    w_t, b2 = prepare_params(weight, bias)
    return one_layer_nn_prepared(x, w_t, b2, weight.shape[0], **kwargs)


# ----------------------------------------------------------------------------
# Self-test
# ----------------------------------------------------------------------------
def _reference_f32(x, weight, bias):
    return jnp.maximum(x.reshape(x.shape[0], -1) @ weight.T + bias, 0.0)


def _reference_bf16(x, weight, bias):
    xb = x.reshape(x.shape[0], -1).astype(jnp.bfloat16).astype(jnp.float32)
    wb = weight.astype(jnp.bfloat16).astype(jnp.float32)
    return jnp.maximum(xb @ wb.T + bias, 0.0)


def _run_case(key, batch, input_dim, seq_len, output_dim, **kwargs):
    in_features = input_dim * seq_len
    kx, kw, kb = jax.random.split(key, 3)
    bound = 1.0 / (in_features ** 0.5)
    weight = jax.random.uniform(kw, (output_dim, in_features), jnp.float32,
                                minval=-bound, maxval=bound)
    bias = jax.random.uniform(kb, (output_dim,), jnp.float32,
                              minval=-bound, maxval=bound)
    x = jax.random.normal(kx, (batch, seq_len, input_dim), jnp.float32)

    w_t, b2 = prepare_params(weight, bias)          # one-time prep
    out = one_layer_nn_prepared(x, w_t, b2, output_dim, **kwargs)
    out = jax.block_until_ready(out)

    assert out.shape == (batch, output_dim)
    # Tight check vs. bf16-input / f32-accumulate math (what the kernel does).
    ref_b = _reference_bf16(x, weight, bias)
    assert jnp.allclose(out, ref_b, atol=1e-3, rtol=1e-3)
    # Loose check vs. full-f32 module semantics (bf16 input rounding only).
    ref_f = _reference_f32(x, weight, bias)
    assert jnp.allclose(out, ref_f, atol=2e-2, rtol=2e-2)
    return out


if __name__ == "__main__":
    key = jax.random.PRNGKey(0)
    k1, k2, k3 = jax.random.split(key, 3)

    # Case 1: small shapes consistent with OneLayerNN(input_dim, output_dim, seq_len).
    _run_case(k1, batch=2, input_dim=4, seq_len=8, output_dim=32)

    # Case 2: ragged shapes + megacore guard (O_pad=384 -> split into 3 N blocks).
    _run_case(k2, batch=3, input_dim=4, seq_len=100, output_dim=300)

    # Case 3: force the K-tiled reduction kernel path (exercise fallback).
    _run_case(k3, batch=5, input_dim=4, seq_len=100, output_dim=40,
              max_tk=128, vmem_budget_bytes=0)

    print("KERNEL_OK")
</pallas_src>

<mosaic_0001>
module attributes {stable_mosaic.version = 11 : i64} {
  func.func @_linear_relu_kernel(%arg0: i32, %arg1: i32, %arg2: memref<16x128xbf16, #tpu.memory_space<vmem>>, %arg3: memref<128x128xbf16, #tpu.memory_space<vmem>>, %arg4: memref<1x128xf32, #tpu.memory_space<vmem>>, %arg5: memref<16x128xf32, #tpu.memory_space<vmem>>) attributes {dimension_semantics = [#tpu.dimension_semantics<parallel>, #tpu.dimension_semantics<parallel>], iteration_bounds = array<i64: 1, 1>, scalar_prefetch = 0 : i64, scratch_operands = 0 : i64, tpu.core_type = #tpu.core_type<tc>, window_params = [{transform_indices = @transform_0, window_bounds = array<i64: 16, 128>}, {transform_indices = @transform_1, window_bounds = array<i64: 128, 128>}, {transform_indices = @transform_2, window_bounds = array<i64: 1, 128>}, {transform_indices = @transform_3, window_bounds = array<i64: 16, 128>}]} {
    %c0 = arith.constant 0 : index
    %c0_0 = arith.constant 0 : index
    %0 = vector.load %arg2[%c0, %c0_0] : memref<16x128xbf16, #tpu.memory_space<vmem>>, vector<16x128xbf16>
    %c0_1 = arith.constant 0 : index
    %c0_2 = arith.constant 0 : index
    %1 = vector.load %arg3[%c0_1, %c0_2] : memref<128x128xbf16, #tpu.memory_space<vmem>>, vector<128x128xbf16>
    %cst = arith.constant dense<0.000000e+00> : vector<16x128xf32>
    %2 = tpu.matmul %0, %1, %cst {dimension_numbers = #tpu.dot_dimension_numbers<[1], [0], [0], [1], [0, 0, 1, 1], [], []>} : vector<16x128xbf16>, vector<128x128xbf16>, vector<16x128xf32> -> vector<16x128xf32>
    %c0_3 = arith.constant 0 : index
    %c0_4 = arith.constant 0 : index
    %3 = vector.load %arg4[%c0_3, %c0_4] : memref<1x128xf32, #tpu.memory_space<vmem>>, vector<1x128xf32>
    %4 = vector.broadcast %3 : vector<1x128xf32> to vector<16x128xf32>
    %5 = arith.addf %2, %4 : vector<16x128xf32>
    %cst_5 = arith.constant 0.000000e+00 : f32
    %6 = vector.broadcast %cst_5 : f32 to vector<16x128xf32>
    %7 = arith.maximumf %5, %6 : vector<16x128xf32>
    %c0_6 = arith.constant 0 : index
    %c0_7 = arith.constant 0 : index
    %8 = vector.load %arg5[%c0_6, %c0_7] : memref<16x128xf32, #tpu.memory_space<vmem>>, vector<16x128xf32>
    tpu.vector_store %arg5[%c0_6, %c0_7], %7 {strides = array<i32>} : memref<16x128xf32, #tpu.memory_space<vmem>>, vector<16x128xf32>,
    return
  }
  func.func @transform_0(%arg0: i32, %arg1: i32) -> (i32, i32) {
    %c0_i32 = arith.constant 0 : i32
    %c0_i32_0 = arith.constant 0 : i32
    return %arg0, %c0_i32 : i32, i32
  }
  func.func @transform_1(%arg0: i32, %arg1: i32) -> (i32, i32) {
    %c0_i32 = arith.constant 0 : i32
    %c0_i32_0 = arith.constant 0 : i32
    return %c0_i32, %arg1 : i32, i32
  }
  func.func @transform_2(%arg0: i32, %arg1: i32) -> (i32, i32) {
    %c0_i32 = arith.constant 0 : i32
    %c0_i32_0 = arith.constant 0 : i32
    return %c0_i32, %arg1 : i32, i32
  }
  func.func @transform_3(%arg0: i32, %arg1: i32) -> (i32, i32) {
    %c0_i32 = arith.constant 0 : i32
    return %arg0, %arg1 : i32, i32
  }
}

</mosaic_0001>

<llo_original>
// kernel: tpu_custom_call.1
$region0: #{tpu_custom_call.1}
  #allocation0 [shape = 'u32[]', space=smem, size = 0x4, offset = 0x4, fixed_abs, tag = 'smem constant byte address 0x4 - core index']
  #allocation1 [shape = 'u32[72,128]{1,0:T(1,128)}', space=vmem, size = 0x9000, scoped, tag = 'internal scratch']
  %s0 = inlined_call_operand.hbm [shape: bf16[16,128], index: 0, kind: input, shape index: {}]
  %s1 = inlined_call_operand.hbm [shape: bf16[128,128], index: 1, kind: input, shape index: {}]
  %s2 = inlined_call_operand.vmem [shape: f32[1,128], index: 2, kind: input, shape index: {}]
  %s3 = inlined_call_operand.hbm [shape: f32[16,128], index: 3, kind: output, shape index: {}]
  %s4 = sld [smem:[#allocation0]]
  $region30: #{tpu_custom_call.1} parent=0
    _
  %s6 = ssub.s32 1, %s4
  %s7 = scalar_select 0, %s6, %s4
  $region1: #{tpu_custom_call.1} parent=0
    #allocation2 [shape = 'u8[4096]{0}', space=vmem, size = 0x1000, scoped, tag = 'input window, operand 0, single buffered']
    #allocation3 [shape = 's32[1]{0}', space=sflag, size = 0x4, scoped, tag = 'scoped memory for tpu_custom_call.1']
    #allocation4 [shape = 's32[1]{0}', space=sflag, size = 0x4, scoped, tag = 'scoped memory for tpu_custom_call.1']
    #allocation5 [shape = 'u8[32768]{0}', space=vmem, size = 0x8000, scoped, tag = 'input window, operand 1, single buffered']
    #allocation6 [shape = 's32[1]{0}', space=sflag, size = 0x4, scoped, tag = 'scoped memory for tpu_custom_call.1']
    #allocation7 [shape = 'u8[8192]{0}', space=vmem, size = 0x2000, scoped, tag = 'output window, operand 0, single buffered']
    %8 = vsyncpa [#allocation3], 0
    %9 = vsyncpa [#allocation6], 0
    %10 = vsyncpa [#allocation4], 0
    // Predicated region
    $region2: #{tpu_custom_call.1} parent=1 // pred_check
      _
    $region3: #{tpu_custom_call.1} parent=1 // pred_check_branch
      %12 = sbr.rel (0) target = $region5
    $region4: #{tpu_custom_call.1} parent=1 // pred_region
      %14 = vsyncadd [#allocation3], 0
      %s15 = sshll.u32 %s0, 4
      %s16 = int_to_ptr.hbm [resolvable:$true] %s15
      %s17 = sshll.u32 [#allocation2], 4
      %s18 = int_to_ptr.vmem [resolvable:$true] %s17
      %23 = dma.hbm_to_vmem [thread:$0]  %s16, 128, %s18, [#allocation3], 64, 64, 4
    $region5: #{tpu_custom_call.1} parent=1 // pred_fallthru
      _
    // Predicated region
    $region6: #{tpu_custom_call.1} parent=1 // pred_check
      _
    $region7: #{tpu_custom_call.1} parent=1 // pred_check_branch
      %25 = sbr.rel (0) target = $region9
    $region8: #{tpu_custom_call.1} parent=1 // pred_region
      %27 = vsyncadd [#allocation6], 0
      %s28 = sshll.u32 %s1, 4
      %s29 = int_to_ptr.hbm [resolvable:$true] %s28
      %s30 = sshll.u32 [#allocation5], 4
      %s31 = int_to_ptr.vmem [resolvable:$true] %s30
      %36 = dma.hbm_to_vmem [thread:$0]  %s29, 1024, %s31, [#allocation6], 64, 64, 4
    $region9: #{tpu_custom_call.1} parent=1 // pred_fallthru
      _
    // Predicated region
    $region10: #{tpu_custom_call.1} parent=1 // pred_check
      _
    $region11: #{tpu_custom_call.1} parent=1 // pred_check_branch
      %38 = sbr.rel (0) target = $region13
    $region12: #{tpu_custom_call.1} parent=1 // pred_region
      _
    $region13: #{tpu_custom_call.1} parent=1 // pred_fallthru
      _
    // Predicated region
    $region14: #{tpu_custom_call.1} parent=1 // pred_check
      _
    $region15: #{tpu_custom_call.1} parent=1 // pred_check_branch
      %40 = sbr.rel (0) target = $region17
    $region16: #{tpu_custom_call.1} parent=1 // pred_region
      %42 = dma.done [#allocation3], 128
    $region17: #{tpu_custom_call.1} parent=1 // pred_fallthru
      _
    // Predicated region
    $region18: #{tpu_custom_call.1} parent=1 // pred_check
      _
    $region19: #{tpu_custom_call.1} parent=1 // pred_check_branch
      %44 = sbr.rel (0) target = $region21
    $region20: #{tpu_custom_call.1} parent=1 // pred_region
      %46 = dma.done [#allocation6], 1024
    $region21: #{tpu_custom_call.1} parent=1 // pred_fallthru
      _
    %v47 = vld [vmem:[#allocation2] sm:$0xf]
    %v48 = vld [vmem:[#allocation2 + $0x4] sm:$0xf]
    %v49 = vld [vmem:[#allocation5] sm:$0xf]
    %v50 = vld [vmem:[#allocation5 + $0x4] sm:$0xf]
    %v51 = vld [vmem:[#allocation5 + $0x8] sm:$0xf]
    %v52 = vld [vmem:[#allocation5 + $0xc] sm:$0xf]
    %v53 = vld [vmem:[#allocation5 + $0x10] sm:$0xf]
    %v54 = vld [vmem:[#allocation5 + $0x14] sm:$0xf]
    %v55 = vld [vmem:[#allocation5 + $0x18] sm:$0xf]
    %v56 = vld [vmem:[#allocation5 + $0x1c] sm:$0xf]
    %v57 = vld [vmem:[#allocation5 + $0x20] sm:$0xf]
    %v58 = vld [vmem:[#allocation5 + $0x24] sm:$0xf]
    %v59 = vld [vmem:[#allocation5 + $0x28] sm:$0xf]
    %v60 = vld [vmem:[#allocation5 + $0x2c] sm:$0xf]
    %v61 = vld [vmem:[#allocation5 + $0x30] sm:$0xf]
    %v62 = vld [vmem:[#allocation5 + $0x34] sm:$0xf]
    %v63 = vld [vmem:[#allocation5 + $0x38] sm:$0xf]
    %v64 = vld [vmem:[#allocation5 + $0x3c] sm:$0xf]
    %v65 = vld [vmem:[%s2] sm:$0x1]
    %v67 = vperm.slane %v65, 0
    %v71 = vunpack.c.l.b16 %v47
    %v72 = vunpack.c.l.b16 %v48
    %v73 = vpack.c.b16 %v72, %v71
    %v91 = vunpack.c.l.b16 %v49
    %v92 = vunpack.c.l.b16 %v50
    %v93 = vunpack.c.l.b16 %v51
    %v94 = vunpack.c.l.b16 %v52
    %v95 = vunpack.c.l.b16 %v53
    %v96 = vunpack.c.l.b16 %v54
    %v97 = vunpack.c.l.b16 %v55
    %v98 = vunpack.c.l.b16 %v56
    %v99 = vunpack.c.l.b16 %v57
    %v100 = vunpack.c.l.b16 %v58
    %v101 = vunpack.c.l.b16 %v59
    %v102 = vunpack.c.l.b16 %v60
    %v103 = vunpack.c.l.b16 %v61
    %v104 = vunpack.c.l.b16 %v62
    %v105 = vunpack.c.l.b16 %v63
    %v106 = vunpack.c.l.b16 %v64
    %v107 = vpack.c.b16 %v92, %v91
    %v108 = vpack.c.b16 %v94, %v93
    %v109 = vpack.c.b16 %v96, %v95
    %v110 = vpack.c.b16 %v98, %v97
    %v111 = vpack.c.b16 %v100, %v99
    %v112 = vpack.c.b16 %v102, %v101
    %v113 = vpack.c.b16 %v104, %v103
    %v114 = vpack.c.b16 %v106, %v105
    %123 = vmatpush.bf16.msra.mxu0 %v114
    %124 = vmatpush.bf16.msra.mxu0 %v113
    %125 = vmatpush.bf16.msra.mxu0 %v112
    %126 = vmatpush.bf16.msra.mxu0 %v111
    %127 = vmatpush.bf16.msra.mxu0 %v110
    %128 = vmatpush.bf16.msra.mxu0 %v109
    %129 = vmatpush.bf16.msra.mxu0 %v108
    %130 = vmatpush.bf16.msra.mxu0 %v107
    %131 = vmatmul.bf16.gmra.mxu0 %v73
    %v132 = vpop.f32.mrf.mxu0
    %v133 = vadd.f32 %v67, %v132
    %v134 = vpop.f32.mrf.mxu0
    %v135 = vadd.f32 %v67, %v134
    %136 = vdwg.mxu0
    %v137 = vmax.f32 %v133, 0.0
    %v138 = vmax.f32 %v135, 0.0
    %139 = vst [vmem:[#allocation7] sm:$0xff] %v137
    %140 = vst [vmem:[#allocation7 + $0x8] sm:$0xff] %v138
    // Predicated region
    $region22: #{tpu_custom_call.1} parent=1 // pred_check
      _
    $region23: #{tpu_custom_call.1} parent=1 // pred_check_branch
      %142 = sbr.rel (0) target = $region25
    $region24: #{tpu_custom_call.1} parent=1 // pred_region
      %144 = vsyncadd [#allocation4], 0
      %s145 = sshll.u32 [#allocation7], 4
      %s146 = int_to_ptr.vmem [resolvable:$true] %s145
      %s147 = sshll.u32 %s3, 4
      %s148 = int_to_ptr.hbm [resolvable:$true] %s147
      %153 = dma.vmem_to_hbm [thread:$0]  %s146, 256, %s148, [#allocation4], 128, 128, 8
    $region25: #{tpu_custom_call.1} parent=1 // pred_fallthru
      _
    // Predicated region
    $region26: #{tpu_custom_call.1} parent=1 // pred_check
      _
    $region27: #{tpu_custom_call.1} parent=1 // pred_check_branch
      %155 = sbr.rel (0) target = $region29
    $region28: #{tpu_custom_call.1} parent=1 // pred_region
      %157 = dma.done [#allocation4], 256
    $region29: #{tpu_custom_call.1} parent=1 // pred_fallthru
      _
    %158 = vsyncpa [#allocation3], 1
    %159 = vsyncpa [#allocation6], 1
    %160 = vsyncpa [#allocation4], 1

</llo_original>
